<compile_context>
chip_gen: v5e
topology: v5e:2x2
jax: 0.10.0
libtpu: 0.0.40
codegen_flags: <defaults>
</compile_context>

<pallas_src>
import functools

import jax
import jax.numpy as jnp
from jax.experimental import pallas as pl
from jax.experimental.pallas import tpu as pltpu


def _round_up(v, m):
    return ((v + m - 1) // m) * m


def _vmem_limit_bytes():
    """Generation-aware VMEM budget (v5e/v6e: 128 MiB, v7x: 64 MiB per core)."""
    try:
        cap = int(pltpu.get_tpu_info().vmem_capacity_bytes)
    except Exception:
        cap = 64 * 1024 * 1024
    # Leave headroom for double-buffers / compiler scratch: ~48 MiB on v7x,
    # up to 96 MiB on v5e/v6e.
    return max(32 * 1024 * 1024, min(cap * 3 // 4, 96 * 1024 * 1024))


def _pick_tiles(n):
    """Prefer 512x512 tiles (HBM-bound streaming of A -> bigger tiles approach
    the HBM roofline and quarter the per-grid-step overhead), but keep >= 2 row
    tiles so the 'parallel' row axis shards across v7x's 2 TensorCores."""
    for t in (512, 256, 128):
        if _round_up(n, t) // t >= 2:
            return t, t
    return 128, 128


# ---------------------------------------------------------------------------
# Projection kernel:  xWl = X @ W_l (bf16),  xWr = X @ W_r (f32)
# ---------------------------------------------------------------------------
def _project_kernel(x_ref, wl_ref, wr_ref, xwl_ref, xwr_ref):
    x = x_ref[...]
    # Two MXU pushes (no concat temporary), f32 accumulation.
    xwl_ref[...] = jnp.dot(x, wl_ref[...],
                           preferred_element_type=jnp.float32).astype(xwl_ref.dtype)
    xwr_ref[...] = jnp.dot(x, wr_ref[...], preferred_element_type=jnp.float32)


def project_features(x, w_l, w_r, *, tm, vmem_limit):
    n_pad, f_in_pad = x.shape
    f_out_pad = w_l.shape[1]
    return pl.pallas_call(
        _project_kernel,
        out_shape=(jax.ShapeDtypeStruct((n_pad, f_out_pad), jnp.bfloat16),
                   jax.ShapeDtypeStruct((n_pad, f_out_pad), jnp.float32)),
        grid_spec=pltpu.PrefetchScalarGridSpec(
            num_scalar_prefetch=0,
            grid=(n_pad // tm,),
            in_specs=[
                pl.BlockSpec((tm, f_in_pad), lambda i: (i, 0)),
                pl.BlockSpec((f_in_pad, f_out_pad), lambda i: (0, 0)),
                pl.BlockSpec((f_in_pad, f_out_pad), lambda i: (0, 0)),
            ],
            out_specs=[pl.BlockSpec((tm, f_out_pad), lambda i: (i, 0)),
                       pl.BlockSpec((tm, f_out_pad), lambda i: (i, 0))],
        ),
        compiler_params=pltpu.CompilerParams(
            dimension_semantics=("parallel",),
            vmem_limit_bytes=vmem_limit),
    )(x, w_l, w_r)


# ---------------------------------------------------------------------------
# Aggregation kernel:  out = A @ xWl + xWr + b  (+ relu / log_softmax)
# ---------------------------------------------------------------------------
def _agg_kernel(flags_ref, fi_ref, fk_ref,            # scalar prefetch (SMEM)
                a_ref, xwl_ref, xwr_ref, b_ref,       # inputs
                o_ref,                                 # output
                acc_ref,                               # VMEM scratch
                *, tk, resident, out_valid, apply_relu, apply_log_softmax):
    i = pl.program_id(0)
    k = pl.program_id(1)
    nk = pl.num_programs(1)

    @pl.when(k == 0)
    def _():
        acc_ref[...] = jnp.zeros_like(acc_ref)

    # Tile-level sparsity: skip the MXU work for all-zero A tiles (their DMA
    # is already skipped by the remapped index_map).
    flag = flags_ref[i * nk + k]

    @pl.when(flag != 0)
    def _():
        if resident:
            start = pl.multiple_of(k * tk, tk)
            xwl = xwl_ref[pl.ds(start, tk), :]
        else:
            xwl = xwl_ref[...]
        acc_ref[...] += jnp.dot(a_ref[...], xwl,
                                preferred_element_type=jnp.float32)

    @pl.when(k == nk - 1)
    def _():
        out = acc_ref[...] + xwr_ref[...] + b_ref[...]
        if apply_relu:
            out = jnp.maximum(out, 0.0)
        if apply_log_softmax:
            # Mask zero-padded lanes to -inf so they don't corrupt the
            # normalizer (exp/log go to the EUP slot, max/sum to XLU).
            lane = jax.lax.broadcasted_iota(jnp.int32, out.shape, 1)
            out = jnp.where(lane < out_valid, out, -jnp.inf)
            m = jnp.max(out, axis=-1, keepdims=True)
            s = out - m
            lse = jnp.log(jnp.sum(jnp.exp(s), axis=-1, keepdims=True))
            out = s - lse
        o_ref[...] = out.astype(o_ref.dtype)


def _tile_fetch_schedule(a, tm, tk):
    """Per-(i,k) nonzero flags + remapped fetch indices.

    Empty tiles re-request the previously fetched (nonzero) block, so Pallas
    skips their DMA (unchanged block index between consecutive grid steps).
    """
    n_pad = a.shape[0]
    ni, nk = n_pad // tm, n_pad // tk
    tiles = a.reshape(ni, tm, nk, tk)
    flags = (jnp.abs(tiles.astype(jnp.float32)).max(axis=(1, 3)) > 0)
    flags_flat = flags.reshape(-1).astype(jnp.int32)               # (ni*nk,)
    L = ni * nk
    pos = jnp.where(flags_flat != 0, jnp.arange(L, dtype=jnp.int32), -1)
    last = jnp.maximum(jax.lax.cummax(pos), 0)                     # last nz tile <= current
    fetch_i = (last // nk).astype(jnp.int32)
    fetch_k = (last % nk).astype(jnp.int32)
    return flags_flat, fetch_i, fetch_k


def sage_layer(a, x, w_l, w_r, b, *, out_valid, out_dtype, vmem_limit,
               apply_relu=False, apply_log_softmax=False, tm=512, tk=512):
    """One SAGEConv layer (+ fused relu / log_softmax), reassociated form."""
    n_pad, f_in_pad = x.shape
    f_out_pad = w_l.shape[1]
    assert n_pad % tm == 0 and n_pad % tk == 0

    # (1) Pre-project features (shrinks the k-loop operand from f_in to f_out).
    xwl, xwr = project_features(x, w_l, w_r, tm=tm, vmem_limit=vmem_limit)

    # (2) Tile-level sparsity schedule (scalar-prefetched to SMEM).
    flags, fetch_i, fetch_k = _tile_fetch_schedule(a, tm, tk)

    ni, nk = n_pad // tm, n_pad // tk

    # (3) Keep the projected neighbor features VMEM-resident when they fit
    #     (single DMA instead of re-streaming them for every row tile).
    resident = (2 * n_pad * f_out_pad * 2) <= (vmem_limit // 4)
    if resident:
        xwl_spec = pl.BlockSpec((n_pad, f_out_pad),
                                lambda i, k, flags, fi, fk: (0, 0))
    else:
        xwl_spec = pl.BlockSpec((tk, f_out_pad),
                                lambda i, k, flags, fi, fk: (k, 0))

    kernel = functools.partial(_agg_kernel, tk=tk, resident=resident,
                               out_valid=out_valid, apply_relu=apply_relu,
                               apply_log_softmax=apply_log_softmax)

    return pl.pallas_call(
        kernel,
        out_shape=jax.ShapeDtypeStruct((n_pad, f_out_pad), out_dtype),
        grid_spec=pltpu.PrefetchScalarGridSpec(
            num_scalar_prefetch=3,
            grid=(ni, nk),
            in_specs=[
                # A tiles: dominant DMA stream -> 3-deep buffering; empty tiles
                # remapped to the previously fetched block (DMA skipped).
                pl.BlockSpec((tm, tk),
                             lambda i, k, flags, fi, fk: (fi[i * nk + k],
                                                          fk[i * nk + k]),
                             pipeline_mode=pl.Buffered(3)),
                xwl_spec,                                              # X @ W_l
                pl.BlockSpec((tm, f_out_pad),
                             lambda i, k, flags, fi, fk: (i, 0)),      # X @ W_r
                pl.BlockSpec((1, f_out_pad),
                             lambda i, k, flags, fi, fk: (0, 0)),      # bias
            ],
            out_specs=pl.BlockSpec((tm, f_out_pad),
                                   lambda i, k, flags, fi, fk: (i, 0)),
            scratch_shapes=[pltpu.VMEM((tm, f_out_pad), jnp.float32)],
        ),
        compiler_params=pltpu.CompilerParams(
            dimension_semantics=("parallel", "arbitrary"),
            vmem_limit_bytes=vmem_limit),
    )(flags, fetch_i, fetch_k, a, xwl, xwr, b)


# ---------------------------------------------------------------------------
# Wrapper glue
# ---------------------------------------------------------------------------
def build_mean_adjacency(edge_index, num_nodes, padded_nodes):
    """Dense row-normalized adjacency (plain JAX glue, f32 norm then bf16)."""
    src, dst = edge_index[0], edge_index[1]
    a = jnp.zeros((num_nodes, num_nodes), jnp.float32)
    a = a.at[dst, src].add(1.0)
    deg = jnp.sum(a, axis=1, keepdims=True)
    a = a / jnp.maximum(deg, 1.0)
    pad = padded_nodes - num_nodes
    a = jnp.pad(a, ((0, pad), (0, pad)))
    return a.astype(jnp.bfloat16)


def _prep_layer(w_l, w_r, b_l, f_in_pad, f_out_pad):
    """Zero-pad weights/bias to lane multiples (separate W_l / W_r, no concat)."""
    def pad2(w):
        return jnp.pad(w, ((0, f_in_pad - w.shape[0]), (0, f_out_pad - w.shape[1])))
    return (pad2(w_l).astype(jnp.bfloat16),
            pad2(w_r).astype(jnp.bfloat16),
            jnp.pad(b_l, ((0, 0), (0, f_out_pad - b_l.shape[1]))).astype(jnp.float32))


def graphsage_forward(x, edge_index, params, *, tm=None, tk=None):
    """Full GraphSAGE forward (eval mode: dropout == identity)."""
    n, c_in = x.shape
    hid = params["w1_l"].shape[1]
    c_out = params["w2_l"].shape[1]

    if tm is None or tk is None:
        tm, tk = _pick_tiles(n)

    n_pad = _round_up(n, max(tm, tk))
    c_in_pad = _round_up(c_in, 128)
    hid_pad = _round_up(hid, 128)
    c_out_pad = _round_up(c_out, 128)

    vmem_limit = _vmem_limit_bytes()

    a = build_mean_adjacency(edge_index, n, n_pad)                 # bf16 [n_pad, n_pad]
    x_p = jnp.pad(x, ((0, n_pad - n), (0, c_in_pad - c_in))).astype(jnp.bfloat16)

    w1l, w1r, b1 = _prep_layer(params["w1_l"], params["w1_r"], params["b1_l"],
                               c_in_pad, hid_pad)
    w2l, w2r, b2 = _prep_layer(params["w2_l"], params["w2_r"], params["b2_l"],
                               hid_pad, c_out_pad)

    # conv1 + relu (fused); hidden stays bf16 + lane-padded for the next layer.
    h = sage_layer(a, x_p, w1l, w1r, b1, out_valid=hid, out_dtype=jnp.bfloat16,
                   apply_relu=True, tm=tm, tk=tk, vmem_limit=vmem_limit)
    # conv2 + log_softmax over features (fused, padded lanes masked to -inf).
    out = sage_layer(a, h, w2l, w2r, b2, out_valid=c_out, out_dtype=jnp.float32,
                     apply_log_softmax=True, tm=tm, tk=tk, vmem_limit=vmem_limit)
    return out[:n, :c_out]


def init_params(key, in_channels, hidden_channels, out_channels):
    k1, k2, k3, k4 = jax.random.split(key, 4)

    def glorot(k, fan_in, fan_out):
        lim = (6.0 / (fan_in + fan_out)) ** 0.5
        # stored as [fan_in, fan_out] so the kernel does x @ W directly
        return jax.random.uniform(k, (fan_in, fan_out), jnp.float32, -lim, lim)

    return {
        "w1_l": glorot(k1, in_channels, hidden_channels),
        "w1_r": glorot(k2, in_channels, hidden_channels),
        "b1_l": jnp.zeros((1, hidden_channels), jnp.float32),
        "w2_l": glorot(k3, hidden_channels, out_channels),
        "w2_r": glorot(k4, hidden_channels, out_channels),
        "b2_l": jnp.zeros((1, out_channels), jnp.float32),
    }


def _reference(x, edge_index, params):
    """Pure-JAX f32 reference (same math, no tiling)."""
    n = x.shape[0]
    src, dst = edge_index[0], edge_index[1]
    a = jnp.zeros((n, n), jnp.float32).at[dst, src].add(1.0)
    a = a / jnp.maximum(a.sum(axis=1, keepdims=True), 1.0)
    h = a @ (x @ params["w1_l"]) + x @ params["w1_r"] + params["b1_l"]
    h = jnp.maximum(h, 0.0)
    o = a @ (h @ params["w2_l"]) + h @ params["w2_r"] + params["b2_l"]
    return jax.nn.log_softmax(o, axis=1)


if __name__ == "__main__":
    N = 64            # nodes
    E = 256           # edges
    IN_C = 16
    HID_C = 32
    OUT_C = 8

    key = jax.random.PRNGKey(0)
    kx, ke, kp = jax.random.split(key, 3)

    x = jax.random.normal(kx, (N, IN_C), jnp.float32)
    edge_index = jax.random.randint(ke, (2, E), 0, N, jnp.int32)
    params = init_params(kp, IN_C, HID_C, OUT_C)

    out = graphsage_forward(x, edge_index, params)
    out = jax.block_until_ready(out)
    assert out.shape == (N, OUT_C)

    # sanity: log_softmax rows should sum (in prob space) to ~1
    probs = jnp.exp(out).sum(axis=1)
    assert bool(jnp.all(jnp.abs(probs - 1.0) < 1e-3))

    # sanity: matches the pure-JAX reference up to bf16 rounding
    ref = _reference(x, edge_index, params)
    assert bool(jnp.all(jnp.abs(out - ref) < 0.2))

    print("KERNEL_OK")
</pallas_src>

<mosaic_0001>
module attributes {stable_mosaic.version = 11 : i64} {
  func.func @_project_kernel(%arg0: i32, %arg1: memref<128x128xbf16, #tpu.memory_space<vmem>>, %arg2: memref<128x128xbf16, #tpu.memory_space<vmem>>, %arg3: memref<128x128xbf16, #tpu.memory_space<vmem>>, %arg4: memref<128x128xbf16, #tpu.memory_space<vmem>>, %arg5: memref<128x128xf32, #tpu.memory_space<vmem>>) attributes {dimension_semantics = [#tpu.dimension_semantics<parallel>], iteration_bounds = array<i64: 1>, scalar_prefetch = 0 : i64, scratch_operands = 0 : i64, tpu.core_type = #tpu.core_type<tc>, window_params = [{transform_indices = @transform_0, window_bounds = array<i64: 128, 128>}, {pipeline_mode = #tpu.pipeline_mode<synchronous>, transform_indices = @transform_1, window_bounds = array<i64: 128, 128>}, {pipeline_mode = #tpu.pipeline_mode<synchronous>, transform_indices = @transform_2, window_bounds = array<i64: 128, 128>}, {transform_indices = @transform_3, window_bounds = array<i64: 128, 128>}, {transform_indices = @transform_4, window_bounds = array<i64: 128, 128>}]} {
    %c0 = arith.constant 0 : index
    %c0_0 = arith.constant 0 : index
    %0 = vector.load %arg1[%c0, %c0_0] : memref<128x128xbf16, #tpu.memory_space<vmem>>, vector<128x128xbf16>
    %c0_1 = arith.constant 0 : index
    %c0_2 = arith.constant 0 : index
    %1 = vector.load %arg2[%c0_1, %c0_2] : memref<128x128xbf16, #tpu.memory_space<vmem>>, vector<128x128xbf16>
    %cst = arith.constant dense<0.000000e+00> : vector<128x128xf32>
    %2 = tpu.matmul %0, %1, %cst {dimension_numbers = #tpu.dot_dimension_numbers<[1], [0], [0], [1], [0, 0, 1, 1], [], []>} : vector<128x128xbf16>, vector<128x128xbf16>, vector<128x128xf32> -> vector<128x128xf32>
    %3 = arith.truncf %2 : vector<128x128xf32> to vector<128x128xbf16>
    %c0_3 = arith.constant 0 : index
    %c0_4 = arith.constant 0 : index
    %4 = vector.load %arg4[%c0_3, %c0_4] : memref<128x128xbf16, #tpu.memory_space<vmem>>, vector<128x128xbf16>
    tpu.vector_store %arg4[%c0_3, %c0_4], %3 {strides = array<i32>} : memref<128x128xbf16, #tpu.memory_space<vmem>>, vector<128x128xbf16>,
    %c0_5 = arith.constant 0 : index
    %c0_6 = arith.constant 0 : index
    %5 = vector.load %arg3[%c0_5, %c0_6] : memref<128x128xbf16, #tpu.memory_space<vmem>>, vector<128x128xbf16>
    %cst_7 = arith.constant dense<0.000000e+00> : vector<128x128xf32>
    %6 = tpu.matmul %0, %5, %cst_7 {dimension_numbers = #tpu.dot_dimension_numbers<[1], [0], [0], [1], [0, 0, 1, 1], [], []>} : vector<128x128xbf16>, vector<128x128xbf16>, vector<128x128xf32> -> vector<128x128xf32>
    %c0_8 = arith.constant 0 : index
    %c0_9 = arith.constant 0 : index
    %7 = vector.load %arg5[%c0_8, %c0_9] : memref<128x128xf32, #tpu.memory_space<vmem>>, vector<128x128xf32>
    tpu.vector_store %arg5[%c0_8, %c0_9], %6 {strides = array<i32>} : memref<128x128xf32, #tpu.memory_space<vmem>>, vector<128x128xf32>,
    return
  }
  func.func @transform_0(%arg0: i32) -> (i32, i32) {
    %c0_i32 = arith.constant 0 : i32
    %c0_i32_0 = arith.constant 0 : i32
    return %arg0, %c0_i32 : i32, i32
  }
  func.func @transform_1(%arg0: i32) -> (i32, i32) {
    %c0_i32 = arith.constant 0 : i32
    %c0_i32_0 = arith.constant 0 : i32
    %c0_i32_1 = arith.constant 0 : i32
    return %c0_i32, %c0_i32_0 : i32, i32
  }
  func.func @transform_2(%arg0: i32) -> (i32, i32) {
    %c0_i32 = arith.constant 0 : i32
    %c0_i32_0 = arith.constant 0 : i32
    %c0_i32_1 = arith.constant 0 : i32
    return %c0_i32, %c0_i32_0 : i32, i32
  }
  func.func @transform_3(%arg0: i32) -> (i32, i32) {
    %c0_i32 = arith.constant 0 : i32
    %c0_i32_0 = arith.constant 0 : i32
    return %arg0, %c0_i32 : i32, i32
  }
  func.func @transform_4(%arg0: i32) -> (i32, i32) {
    %c0_i32 = arith.constant 0 : i32
    %c0_i32_0 = arith.constant 0 : i32
    return %arg0, %c0_i32 : i32, i32
  }
}

</mosaic_0001>

<llo_original>
// kernel: tpu_custom_call.1
$region0: #{tpu_custom_call.1}
  #allocation0 [shape = 'u32[]', space=smem, size = 0x4, offset = 0x4, fixed_abs, tag = 'smem constant byte address 0x4 - core index']
  #allocation1 [shape = 'u32[72,128]{1,0:T(1,128)}', space=vmem, size = 0x9000, scoped, tag = 'internal scratch']
  %s0 = inlined_call_operand.hbm [shape: bf16[128,128], index: 0, kind: input, shape index: {}]
  %s1 = inlined_call_operand.hbm [shape: bf16[128,128], index: 1, kind: input, shape index: {}]
  %s2 = inlined_call_operand.hbm [shape: bf16[128,128], index: 2, kind: input, shape index: {}]
  %s3 = inlined_call_operand.hbm [shape: bf16[128,128], index: 3, kind: output, shape index: {0}]
  %s4 = inlined_call_operand.hbm [shape: f32[128,128], index: 4, kind: output, shape index: {1}]
  %5 = xla_tuple %s3, %s4
  %s6 = sld [smem:[#allocation0]]
  $region42: #{tpu_custom_call.1} parent=0
    _
  %s8 = ssub.s32 1, %s6
  %s9 = scalar_select 0, %s8, %s6
  $region1: #{tpu_custom_call.1} parent=0
    #allocation2 [shape = 'u8[32768]{0}', space=vmem, size = 0x8000, scoped, tag = 'input window, operand 0, single buffered']
    #allocation3 [shape = 's32[1]{0}', space=sflag, size = 0x4, scoped, tag = 'scoped memory for tpu_custom_call.1']
    #allocation4 [shape = 's32[1]{0}', space=sflag, size = 0x4, scoped, tag = 'scoped memory for tpu_custom_call.1']
    #allocation5 [shape = 'u8[32768]{0}', space=vmem, size = 0x8000, scoped, tag = 'input window, operand 1, single buffered']
    #allocation6 [shape = 's32[1]{0}', space=sflag, size = 0x4, scoped, tag = 'scoped memory for tpu_custom_call.1']
    #allocation7 [shape = 'u8[32768]{0}', space=vmem, size = 0x8000, scoped, tag = 'input window, operand 2, single buffered']
    #allocation8 [shape = 'u8[32768]{0}', space=vmem, size = 0x8000, scoped, tag = 'output window, operand 0, single buffered']
    #allocation9 [shape = 'u8[65536]{0}', space=vmem, size = 0x10000, scoped, tag = 'output window, operand 1, single buffered']
    #allocation10 [shape = 's32[1]{0}', space=sflag, size = 0x4, scoped, tag = 'scoped memory for tpu_custom_call.1']
    %10 = vsyncpa [#allocation3], 0
    %11 = vsyncpa [#allocation6], 0
    %12 = vsyncpa [#allocation4], 0
    %13 = vsyncpa [#allocation10], 0
    // Predicated region
    $region2: #{tpu_custom_call.1} parent=1 // pred_check
      _
    $region3: #{tpu_custom_call.1} parent=1 // pred_check_branch
      %15 = sbr.rel (0) target = $region5
    $region4: #{tpu_custom_call.1} parent=1 // pred_region
      %17 = vsyncadd [#allocation3], 0
      %s18 = sshll.u32 %s0, 4
      %s19 = int_to_ptr.hbm [resolvable:$true] %s18
      %s20 = sshll.u32 [#allocation2], 4
      %s21 = int_to_ptr.vmem [resolvable:$true] %s20
      %26 = dma.hbm_to_vmem [thread:$0]  %s19, 1024, %s21, [#allocation3], 64, 64, 4
    $region5: #{tpu_custom_call.1} parent=1 // pred_fallthru
      _
    // Predicated region
    $region6: #{tpu_custom_call.1} parent=1 // pred_check
      _
    $region7: #{tpu_custom_call.1} parent=1 // pred_check_branch
      %28 = sbr.rel (0) target = $region9
    $region8: #{tpu_custom_call.1} parent=1 // pred_region
      %30 = vsyncadd [#allocation6], 0
      %s31 = sshll.u32 %s1, 4
      %s32 = int_to_ptr.hbm [resolvable:$true] %s31
      %s33 = sshll.u32 [#allocation5], 4
      %s34 = int_to_ptr.vmem [resolvable:$true] %s33
      %39 = dma.hbm_to_vmem [thread:$0]  %s32, 1024, %s34, [#allocation6], 64, 64, 4
    $region9: #{tpu_custom_call.1} parent=1 // pred_fallthru
      _
    // Predicated region
    $region10: #{tpu_custom_call.1} parent=1 // pred_check
      _
    $region11: #{tpu_custom_call.1} parent=1 // pred_check_branch
      %41 = sbr.rel (0) target = $region13
    $region12: #{tpu_custom_call.1} parent=1 // pred_region
      %43 = vsyncadd [#allocation6], 0
      %s44 = sshll.u32 %s2, 4
      %s45 = int_to_ptr.hbm [resolvable:$true] %s44
      %s46 = sshll.u32 [#allocation7], 4
      %s47 = int_to_ptr.vmem [resolvable:$true] %s46
      %52 = dma.hbm_to_vmem [thread:$0]  %s45, 1024, %s47, [#allocation6], 64, 64, 4
    $region13: #{tpu_custom_call.1} parent=1 // pred_fallthru
      _
    // Predicated region
    $region14: #{tpu_custom_call.1} parent=1 // pred_check
      _
    $region15: #{tpu_custom_call.1} parent=1 // pred_check_branch
      %54 = sbr.rel (0) target = $region17
    $region16: #{tpu_custom_call.1} parent=1 // pred_region
      %56 = dma.done [#allocation3], 1024
    $region17: #{tpu_custom_call.1} parent=1 // pred_fallthru
      _
    // Predicated region
    $region18: #{tpu_custom_call.1} parent=1 // pred_check
      _
    $region19: #{tpu_custom_call.1} parent=1 // pred_check_branch
      %58 = sbr.rel (0) target = $region21
    $region20: #{tpu_custom_call.1} parent=1 // pred_region
      %60 = dma.done [#allocation6], 1024
    $region21: #{tpu_custom_call.1} parent=1 // pred_fallthru
      _
    // Predicated region
    $region22: #{tpu_custom_call.1} parent=1 // pred_check
      _
    $region23: #{tpu_custom_call.1} parent=1 // pred_check_branch
      %62 = sbr.rel (0) target = $region25
    $region24: #{tpu_custom_call.1} parent=1 // pred_region
      %64 = dma.done [#allocation6], 1024
    $region25: #{tpu_custom_call.1} parent=1 // pred_fallthru
      _
    %v65 = vld [vmem:[#allocation2] sm:$0xf]
    %v66 = vld [vmem:[#allocation2 + $0x4] sm:$0xf]
    %v67 = vld [vmem:[#allocation2 + $0x8] sm:$0xf]
    %v68 = vld [vmem:[#allocation2 + $0xc] sm:$0xf]
    %v69 = vld [vmem:[#allocation2 + $0x10] sm:$0xf]
    %v70 = vld [vmem:[#allocation2 + $0x14] sm:$0xf]
    %v71 = vld [vmem:[#allocation2 + $0x18] sm:$0xf]
    %v72 = vld [vmem:[#allocation2 + $0x1c] sm:$0xf]
    %v73 = vld [vmem:[#allocation2 + $0x20] sm:$0xf]
    %v74 = vld [vmem:[#allocation2 + $0x24] sm:$0xf]
    %v75 = vld [vmem:[#allocation2 + $0x28] sm:$0xf]
    %v76 = vld [vmem:[#allocation2 + $0x2c] sm:$0xf]
    %v77 = vld [vmem:[#allocation2 + $0x30] sm:$0xf]
    %v78 = vld [vmem:[#allocation2 + $0x34] sm:$0xf]
    %v79 = vld [vmem:[#allocation2 + $0x38] sm:$0xf]
    %v80 = vld [vmem:[#allocation2 + $0x3c] sm:$0xf]
    %v81 = vld [vmem:[#allocation5] sm:$0xf]
    %v82 = vld [vmem:[#allocation5 + $0x4] sm:$0xf]
    %v83 = vld [vmem:[#allocation5 + $0x8] sm:$0xf]
    %v84 = vld [vmem:[#allocation5 + $0xc] sm:$0xf]
    %v85 = vld [vmem:[#allocation5 + $0x10] sm:$0xf]
    %v86 = vld [vmem:[#allocation5 + $0x14] sm:$0xf]
    %v87 = vld [vmem:[#allocation5 + $0x18] sm:$0xf]
    %v88 = vld [vmem:[#allocation5 + $0x1c] sm:$0xf]
    %v89 = vld [vmem:[#allocation5 + $0x20] sm:$0xf]
    %v90 = vld [vmem:[#allocation5 + $0x24] sm:$0xf]
    %v91 = vld [vmem:[#allocation5 + $0x28] sm:$0xf]
    %v92 = vld [vmem:[#allocation5 + $0x2c] sm:$0xf]
    %v93 = vld [vmem:[#allocation5 + $0x30] sm:$0xf]
    %v94 = vld [vmem:[#allocation5 + $0x34] sm:$0xf]
    %v95 = vld [vmem:[#allocation5 + $0x38] sm:$0xf]
    %v96 = vld [vmem:[#allocation5 + $0x3c] sm:$0xf]
    %v113 = vunpack.c.l.b16 %v65
    %v114 = vunpack.c.l.b16 %v66
    %v115 = vunpack.c.l.b16 %v67
    %v116 = vunpack.c.l.b16 %v68
    %v117 = vunpack.c.l.b16 %v69
    %v118 = vunpack.c.l.b16 %v70
    %v119 = vunpack.c.l.b16 %v71
    %v120 = vunpack.c.l.b16 %v72
    %v121 = vunpack.c.l.b16 %v73
    %v122 = vunpack.c.l.b16 %v74
    %v123 = vunpack.c.l.b16 %v75
    %v124 = vunpack.c.l.b16 %v76
    %v125 = vunpack.c.l.b16 %v77
    %v126 = vunpack.c.l.b16 %v78
    %v127 = vunpack.c.l.b16 %v79
    %v128 = vunpack.c.l.b16 %v80
    %v129 = vpack.c.b16 %v114, %v113
    %v130 = vpack.c.b16 %v116, %v115
    %v131 = vpack.c.b16 %v118, %v117
    %v132 = vpack.c.b16 %v120, %v119
    %v133 = vpack.c.b16 %v122, %v121
    %v134 = vpack.c.b16 %v124, %v123
    %v135 = vpack.c.b16 %v126, %v125
    %v136 = vpack.c.b16 %v128, %v127
    %v161 = vunpack.c.l.b16 %v81
    %v162 = vunpack.c.l.b16 %v82
    %v163 = vunpack.c.l.b16 %v83
    %v164 = vunpack.c.l.b16 %v84
    %v165 = vunpack.c.l.b16 %v85
    %v166 = vunpack.c.l.b16 %v86
    %v167 = vunpack.c.l.b16 %v87
    %v168 = vunpack.c.l.b16 %v88
    %v169 = vunpack.c.l.b16 %v89
    %v170 = vunpack.c.l.b16 %v90
    %v171 = vunpack.c.l.b16 %v91
    %v172 = vunpack.c.l.b16 %v92
    %v173 = vunpack.c.l.b16 %v93
    %v174 = vunpack.c.l.b16 %v94
    %v175 = vunpack.c.l.b16 %v95
    %v176 = vunpack.c.l.b16 %v96
    %v177 = vpack.c.b16 %v162, %v161
    %v178 = vpack.c.b16 %v164, %v163
    %v179 = vpack.c.b16 %v166, %v165
    %v180 = vpack.c.b16 %v168, %v167
    %v181 = vpack.c.b16 %v170, %v169
    %v182 = vpack.c.b16 %v172, %v171
    %v183 = vpack.c.b16 %v174, %v173
    %v184 = vpack.c.b16 %v176, %v175
    %193 = vmatpush.bf16.msra.mxu0 %v184
    %194 = vmatpush.bf16.msra.mxu0 %v183
    %195 = vmatpush.bf16.msra.mxu0 %v182
    %196 = vmatpush.bf16.msra.mxu0 %v181
    %197 = vmatpush.bf16.msra.mxu0 %v180
    %198 = vmatpush.bf16.msra.mxu0 %v179
    %199 = vmatpush.bf16.msra.mxu0 %v178
    %200 = vmatpush.bf16.msra.mxu0 %v177
    %201 = vmatmul.bf16.gmra.mxu0 %v129
    %v202 = vpop.f32.mrf.mxu0
    %v203 = vadd.f32 0.0, %v202
    %v204 = vpop.f32.mrf.mxu0
    %v205 = vadd.f32 0.0, %v204
    %206 = vmatmul.bf16.gmra.mxu0 %v130
    %v207 = vpop.f32.mrf.mxu0
    %v208 = vadd.f32 0.0, %v207
    %v209 = vpop.f32.mrf.mxu0
    %v210 = vadd.f32 0.0, %v209
    %211 = vmatmul.bf16.gmra.mxu0 %v131
    %v212 = vpop.f32.mrf.mxu0
    %v213 = vadd.f32 0.0, %v212
    %v214 = vpop.f32.mrf.mxu0
    %v215 = vadd.f32 0.0, %v214
    %216 = vmatmul.bf16.gmra.mxu0 %v132
    %v217 = vpop.f32.mrf.mxu0
    %v218 = vadd.f32 0.0, %v217
    %v219 = vpop.f32.mrf.mxu0
    %v220 = vadd.f32 0.0, %v219
    %221 = vmatmul.bf16.gmra.mxu0 %v133
    %v222 = vpop.f32.mrf.mxu0
    %v223 = vadd.f32 0.0, %v222
    %v224 = vpop.f32.mrf.mxu0
    %v225 = vadd.f32 0.0, %v224
    %226 = vmatmul.bf16.gmra.mxu0 %v134
    %v227 = vpop.f32.mrf.mxu0
    %v228 = vadd.f32 0.0, %v227
    %v229 = vpop.f32.mrf.mxu0
    %v230 = vadd.f32 0.0, %v229
    %231 = vmatmul.bf16.gmra.mxu0 %v135
    %v232 = vpop.f32.mrf.mxu0
    %v233 = vadd.f32 0.0, %v232
    %v234 = vpop.f32.mrf.mxu0
    %v235 = vadd.f32 0.0, %v234
    %236 = vmatmul.bf16.gmra.mxu0 %v136
    %v237 = vpop.f32.mrf.mxu0
    %v238 = vadd.f32 0.0, %v237
    %v239 = vpop.f32.mrf.mxu0
    %v240 = vadd.f32 0.0, %v239
    %241 = vdwg.mxu0
    %v242 = vpack.c.bf16 %v203, %v203
    %v243 = vpack.c.bf16 %v205, %v205
    %v244 = vpack.c.bf16 %v208, %v208
    %v245 = vpack.c.bf16 %v210, %v210
    %v246 = vpack.c.bf16 %v213, %v213
    %v247 = vpack.c.bf16 %v215, %v215
    %v248 = vpack.c.bf16 %v218, %v218
    %v249 = vpack.c.bf16 %v220, %v220
    %v250 = vpack.c.bf16 %v223, %v223
    %v251 = vpack.c.bf16 %v225, %v225
    %v252 = vpack.c.bf16 %v228, %v228
    %v253 = vpack.c.bf16 %v230, %v230
    %v254 = vpack.c.bf16 %v233, %v233
    %v255 = vpack.c.bf16 %v235, %v235
    %v256 = vpack.c.bf16 %v238, %v238
    %v257 = vpack.c.bf16 %v240, %v240
    %258 = vst [vmem:[#allocation8] sm:$0xf] %v242
    %259 = vst [vmem:[#allocation8 + $0x4] sm:$0xf] %v243
    %260 = vst [vmem:[#allocation8 + $0x8] sm:$0xf] %v244
    %261 = vst [vmem:[#allocation8 + $0xc] sm:$0xf] %v245
    %262 = vst [vmem:[#allocation8 + $0x10] sm:$0xf] %v246
    %263 = vst [vmem:[#allocation8 + $0x14] sm:$0xf] %v247
    %264 = vst [vmem:[#allocation8 + $0x18] sm:$0xf] %v248
    %265 = vst [vmem:[#allocation8 + $0x1c] sm:$0xf] %v249
    %266 = vst [vmem:[#allocation8 + $0x20] sm:$0xf] %v250
    %267 = vst [vmem:[#allocation8 + $0x24] sm:$0xf] %v251
    %268 = vst [vmem:[#allocation8 + $0x28] sm:$0xf] %v252
    %269 = vst [vmem:[#allocation8 + $0x2c] sm:$0xf] %v253
    %270 = vst [vmem:[#allocation8 + $0x30] sm:$0xf] %v254
    %271 = vst [vmem:[#allocation8 + $0x34] sm:$0xf] %v255
    %272 = vst [vmem:[#allocation8 + $0x38] sm:$0xf] %v256
    %273 = vst [vmem:[#allocation8 + $0x3c] sm:$0xf] %v257
    %v274 = vld [vmem:[#allocation7] sm:$0xf]
    %v275 = vld [vmem:[#allocation7 + $0x4] sm:$0xf]
    %v276 = vld [vmem:[#allocation7 + $0x8] sm:$0xf]
    %v277 = vld [vmem:[#allocation7 + $0xc] sm:$0xf]
    %v278 = vld [vmem:[#allocation7 + $0x10] sm:$0xf]
    %v279 = vld [vmem:[#allocation7 + $0x14] sm:$0xf]
    %v280 = vld [vmem:[#allocation7 + $0x18] sm:$0xf]
    %v281 = vld [vmem:[#allocation7 + $0x1c] sm:$0xf]
    %v282 = vld [vmem:[#allocation7 + $0x20] sm:$0xf]
    %v283 = vld [vmem:[#allocation7 + $0x24] sm:$0xf]
    %v284 = vld [vmem:[#allocation7 + $0x28] sm:$0xf]
    %v285 = vld [vmem:[#allocation7 + $0x2c] sm:$0xf]
    %v286 = vld [vmem:[#allocation7 + $0x30] sm:$0xf]
    %v287 = vld [vmem:[#allocation7 + $0x34] sm:$0xf]
    %v288 = vld [vmem:[#allocation7 + $0x38] sm:$0xf]
    %v289 = vld [vmem:[#allocation7 + $0x3c] sm:$0xf]
    %v306 = vunpack.c.l.b16 %v274
    %v307 = vunpack.c.l.b16 %v275
    %v308 = vunpack.c.l.b16 %v276
    %v309 = vunpack.c.l.b16 %v277
    %v310 = vunpack.c.l.b16 %v278
    %v311 = vunpack.c.l.b16 %v279
    %v312 = vunpack.c.l.b16 %v280
    %v313 = vunpack.c.l.b16 %v281
    %v314 = vunpack.c.l.b16 %v282
    %v315 = vunpack.c.l.b16 %v283
    %v316 = vunpack.c.l.b16 %v284
    %v317 = vunpack.c.l.b16 %v285
    %v318 = vunpack.c.l.b16 %v286
    %v319 = vunpack.c.l.b16 %v287
    %v320 = vunpack.c.l.b16 %v288
    %v321 = vunpack.c.l.b16 %v289
    %v322 = vpack.c.b16 %v307, %v306
    %v323 = vpack.c.b16 %v309, %v308
    %v324 = vpack.c.b16 %v311, %v310
    %v325 = vpack.c.b16 %v313, %v312
    %v326 = vpack.c.b16 %v315, %v314
    %v327 = vpack.c.b16 %v317, %v316
    %v328 = vpack.c.b16 %v319, %v318
    %v329 = vpack.c.b16 %v321, %v320
    %338 = vmatpush.bf16.msra.mxu0 %v329
    %339 = vmatpush.bf16.msra.mxu0 %v328
    %340 = vmatpush.bf16.msra.mxu0 %v327
    %341 = vmatpush.bf16.msra.mxu0 %v326
    %342 = vmatpush.bf16.msra.mxu0 %v325
    %343 = vmatpush.bf16.msra.mxu0 %v324
    %344 = vmatpush.bf16.msra.mxu0 %v323
    %345 = vmatpush.bf16.msra.mxu0 %v322
    %346 = vmatmul.bf16.gmra.mxu0 %v129
    %v347 = vpop.f32.mrf.mxu0
    %v348 = vadd.f32 0.0, %v347
    %v349 = vpop.f32.mrf.mxu0
    %v350 = vadd.f32 0.0, %v349
    %351 = vmatmul.bf16.gmra.mxu0 %v130
    %v352 = vpop.f32.mrf.mxu0
    %v353 = vadd.f32 0.0, %v352
    %v354 = vpop.f32.mrf.mxu0
    %v355 = vadd.f32 0.0, %v354
    %356 = vmatmul.bf16.gmra.mxu0 %v131
    %v357 = vpop.f32.mrf.mxu0
    %v358 = vadd.f32 0.0, %v357
    %v359 = vpop.f32.mrf.mxu0
    %v360 = vadd.f32 0.0, %v359
    %361 = vmatmul.bf16.gmra.mxu0 %v132
    %v362 = vpop.f32.mrf.mxu0
    %v363 = vadd.f32 0.0, %v362
    %v364 = vpop.f32.mrf.mxu0
    %v365 = vadd.f32 0.0, %v364
    %366 = vmatmul.bf16.gmra.mxu0 %v133
    %v367 = vpop.f32.mrf.mxu0
    %v368 = vadd.f32 0.0, %v367
    %v369 = vpop.f32.mrf.mxu0
    %v370 = vadd.f32 0.0, %v369
    %371 = vmatmul.bf16.gmra.mxu0 %v134
    %v372 = vpop.f32.mrf.mxu0
    %v373 = vadd.f32 0.0, %v372
    %v374 = vpop.f32.mrf.mxu0
    %v375 = vadd.f32 0.0, %v374
    %376 = vmatmul.bf16.gmra.mxu0 %v135
    %v377 = vpop.f32.mrf.mxu0
    %v378 = vadd.f32 0.0, %v377
    %v379 = vpop.f32.mrf.mxu0
    %v380 = vadd.f32 0.0, %v379
    %381 = vmatmul.bf16.gmra.mxu0 %v136
    %v382 = vpop.f32.mrf.mxu0
    %v383 = vadd.f32 0.0, %v382
    %v384 = vpop.f32.mrf.mxu0
    %v385 = vadd.f32 0.0, %v384
    %386 = vdwg.mxu0
    %387 = vst [vmem:[#allocation9] sm:$0xff] %v348
    %388 = vst [vmem:[#allocation9 + $0x8] sm:$0xff] %v350
    %389 = vst [vmem:[#allocation9 + $0x10] sm:$0xff] %v353
    %390 = vst [vmem:[#allocation9 + $0x18] sm:$0xff] %v355
    %391 = vst [vmem:[#allocation9 + $0x20] sm:$0xff] %v358
    %392 = vst [vmem:[#allocation9 + $0x28] sm:$0xff] %v360
    %393 = vst [vmem:[#allocation9 + $0x30] sm:$0xff] %v363
    %394 = vst [vmem:[#allocation9 + $0x38] sm:$0xff] %v365
    %395 = vst [vmem:[#allocation9 + $0x40] sm:$0xff] %v368
    %396 = vst [vmem:[#allocation9 + $0x48] sm:$0xff] %v370
    %397 = vst [vmem:[#allocation9 + $0x50] sm:$0xff] %v373
    %398 = vst [vmem:[#allocation9 + $0x58] sm:$0xff] %v375
    %399 = vst [vmem:[#allocation9 + $0x60] sm:$0xff] %v378
    %400 = vst [vmem:[#allocation9 + $0x68] sm:$0xff] %v380
    %401 = vst [vmem:[#allocation9 + $0x70] sm:$0xff] %v383
    %402 = vst [vmem:[#allocation9 + $0x78] sm:$0xff] %v385
    // Predicated region
    $region26: #{tpu_custom_call.1} parent=1 // pred_check
      _
    $region27: #{tpu_custom_call.1} parent=1 // pred_check_branch
      %404 = sbr.rel (0) target = $region29
    $region28: #{tpu_custom_call.1} parent=1 // pred_region
      %406 = vsyncadd [#allocation4], 0
      %s407 = sshll.u32 [#allocation8], 4
      %s408 = int_to_ptr.vmem [resolvable:$true] %s407
      %s409 = sshll.u32 %s3, 4
      %s410 = int_to_ptr.hbm [resolvable:$true] %s409
      %415 = dma.vmem_to_hbm [thread:$0]  %s408, 1024, %s410, [#allocation4], 64, 64, 4
    $region29: #{tpu_custom_call.1} parent=1 // pred_fallthru
      _
    // Predicated region
    $region30: #{tpu_custom_call.1} parent=1 // pred_check
      _
    $region31: #{tpu_custom_call.1} parent=1 // pred_check_branch
      %417 = sbr.rel (0) target = $region33
    $region32: #{tpu_custom_call.1} parent=1 // pred_region
      %419 = vsyncadd [#allocation10], 0
      %s420 = sshll.u32 [#allocation9], 4
      %s421 = int_to_ptr.vmem [resolvable:$true] %s420
      %s422 = sshll.u32 %s4, 4
      %s423 = int_to_ptr.hbm [resolvable:$true] %s422
      %428 = dma.vmem_to_hbm [thread:$0]  %s421, 2048, %s423, [#allocation10], 128, 128, 8
    $region33: #{tpu_custom_call.1} parent=1 // pred_fallthru
      _
    // Predicated region
    $region34: #{tpu_custom_call.1} parent=1 // pred_check
      _
    $region35: #{tpu_custom_call.1} parent=1 // pred_check_branch
      %430 = sbr.rel (0) target = $region37
    $region36: #{tpu_custom_call.1} parent=1 // pred_region
      %432 = dma.done [#allocation4], 1024
    $region37: #{tpu_custom_call.1} parent=1 // pred_fallthru
      _
    // Predicated region
    $region38: #{tpu_custom_call.1} parent=1 // pred_check
      _
    $region39: #{tpu_custom_call.1} parent=1 // pred_check_branch
      %434 = sbr.rel (0) target = $region41
    $region40: #{tpu_custom_call.1} parent=1 // pred_region
      %436 = dma.done [#allocation10], 2048
    $region41: #{tpu_custom_call.1} parent=1 // pred_fallthru
      _
    %437 = vsyncpa [#allocation3], 1
    %438 = vsyncpa [#allocation6], 1
    %439 = vsyncpa [#allocation4], 1
    %440 = vsyncpa [#allocation10], 1

</llo_original>
